<compile_context>
chip_gen: v7x
topology: tpu7x:2x2x1
jax: 0.10.0
libtpu: 0.0.40
codegen_flags: <defaults>
</compile_context>

<pallas_src>
import functools

import jax
import jax.numpy as jnp
from jax.experimental import pallas as pl
from jax.experimental.pallas import tpu as pltpu

Z_DIM = 16                    # latent_dim
X_DIM = 1                     # observation_dim
INTER_DIM = 16                # intermediate layer dim
OUT_DIM = 2 * X_DIM           # (mu, logvar)
_LANE = 128                   # TPU lane width


def _round_up(x, m):
    return (x + m - 1) // m * m


def _decoder_mlp_kernel(zt_ref, w1_ref, b1_ref, w2_ref, b2_ref, o_ref):
    """Fused MLP on a transposed, lane-dense tile.

    zt_ref : (Z_DIM, T)        rows of z on the 128-lane axis
    w1_ref : (INTER_DIM, Z_DIM)   layer-1 weight, PyTorch (out, in) layout
    b1_ref : (INTER_DIM, 1)
    w2_ref : (INTER_DIM, OUT_DIM) layer-2 weight, (in, out) layout
    b2_ref : (OUT_DIM, 1)
    o_ref  : (OUT_DIM, T)      row 0 = mu, row 1 = logvar
    """
    zt = zt_ref[...].astype(jnp.float32)                       # (16, T)

    # Layer 1 on the MXU: (16,16) @ (16,T) -> (16,T); N dim is lane-dense.
    h = jnp.dot(w1_ref[...].astype(jnp.float32), zt,
                preferred_element_type=jnp.float32) + b1_ref[...]
    h = jnp.tanh(h)                                            # (16, T)

    # Layer 2 (OUT_DIM = 2): broadcast-multiply + cross-sublane reduce on the
    # VPU/XLU — avoids a nearly-empty MXU matmul and its masked result path.
    w2 = w2_ref[...].astype(jnp.float32)                       # (16, 2)
    b2 = b2_ref[...].astype(jnp.float32)                       # (2, 1)
    mu_row = jnp.sum(w2[:, 0:1] * h, axis=0, keepdims=True) + b2[0:1, :]   # (1, T)
    lv_row = jnp.sum(w2[:, 1:2] * h, axis=0, keepdims=True) + b2[1:2, :]   # (1, T)

    o_ref[...] = jnp.concatenate([mu_row, lv_row], axis=0).astype(o_ref.dtype)


@functools.partial(jax.jit, static_argnames=("row_tile",))
def decoder_mlp_forward(z, w1, b1, w2, b2, row_tile=16384):
    """DecoderMLP forward.

    z : (seq_len, batch, Z_DIM), float32 or bfloat16.
    Returns (mu, logvar), each (seq_len, batch, X_DIM) float32.
    """
    seq_len, batch, latent_dim = z.shape
    assert latent_dim == Z_DIM
    n_rows = seq_len * batch

    # Transpose once upstream so loads and stores are lane-dense inside the
    # kernel: rows on the 128-lane axis, features on the sublane axis.
    z_t = z.reshape(n_rows, Z_DIM).T                            # (Z_DIM, n_rows)

    # Tile sizing: rows-per-step must be a multiple of 128 (lane axis).  Use
    # large tiles (default 16K rows ~= 1 MiB f32) to amortize the ~0.35 us
    # per-grid-step overhead, clamped to the (padded) problem size so tiny
    # inputs still work.  16x16384x4 B x 2 buffers ~= 2 MiB VMEM — far within
    # the scoped limit on v5e/v6e/v7x.
    n_rows_lane = _round_up(n_rows, _LANE)
    tile = min(max(_LANE, _round_up(row_tile, _LANE)), n_rows_lane)
    n_rows_pad = _round_up(n_rows, tile)
    if n_rows_pad != n_rows:
        z_t = jnp.pad(z_t, ((0, 0), (0, n_rows_pad - n_rows)))
    grid = (n_rows_pad // tile,)

    out_t = pl.pallas_call(
        _decoder_mlp_kernel,
        out_shape=jax.ShapeDtypeStruct((OUT_DIM, n_rows_pad), jnp.float32),
        grid_spec=pltpu.PrefetchScalarGridSpec(
            num_scalar_prefetch=0,
            grid=grid,
            in_specs=[
                pl.BlockSpec((Z_DIM, tile), lambda i: (0, i)),         # z (transposed)
                pl.BlockSpec((INTER_DIM, Z_DIM), lambda i: (0, 0)),    # W1 (out, in)
                pl.BlockSpec((INTER_DIM, 1), lambda i: (0, 0)),        # b1
                pl.BlockSpec((INTER_DIM, OUT_DIM), lambda i: (0, 0)),  # W2 (in, out)
                pl.BlockSpec((OUT_DIM, 1), lambda i: (0, 0)),          # b2
            ],
            out_specs=pl.BlockSpec((OUT_DIM, tile), lambda i: (0, i)),
        ),
        compiler_params=pltpu.CompilerParams(
            # Row axis is embarrassingly parallel -> lets v7x shard the grid
            # across both TensorCores; harmless on v5e/v6e.
            dimension_semantics=("parallel",),
        ),
    )(z_t, w1, b1, w2, b2)

    # Contiguous split of mu / logvar by leading row (no strided last-dim slice).
    mu = out_t[0, :n_rows].reshape(seq_len, batch, X_DIM)
    logvar = out_t[1, :n_rows].reshape(seq_len, batch, X_DIM)
    return mu, logvar


def init_params(key):
    """Deterministic parameter init matching nn.Linear shapes.

    PyTorch layers:
      mlp[0]: Linear(16, 16) -> W1_torch (16,16), b1 (16,)
      mlp[2]: Linear(16, 2)  -> W2_torch (2,16),  b2 (2,)
    Kernel layout:
      w1 = W1_torch            (out, in)  = (16, 16)   (h^T = W1 @ z^T + b1)
      w2 = W2_torch.T          (in, out)  = (16, 2)
      b1 : (16, 1),  b2 : (2, 1)
    """
    k1, k2, k3, k4 = jax.random.split(key, 4)
    bound1 = 1.0 / jnp.sqrt(Z_DIM)
    bound2 = 1.0 / jnp.sqrt(INTER_DIM)
    w1 = jax.random.uniform(k1, (INTER_DIM, Z_DIM), jnp.float32, -bound1, bound1)
    b1 = jax.random.uniform(k2, (INTER_DIM, 1), jnp.float32, -bound1, bound1)
    w2 = jax.random.uniform(k3, (INTER_DIM, OUT_DIM), jnp.float32, -bound2, bound2)
    b2 = jax.random.uniform(k4, (OUT_DIM, 1), jnp.float32, -bound2, bound2)
    return w1, b1, w2, b2


def reference_forward(z, w1, b1, w2, b2):
    """Pure-JAX reference with the same parameter layout as the kernel."""
    h = jnp.tanh(z @ w1.T + b1[:, 0])          # (S, B, 16)
    out = h @ w2 + b2[:, 0]                    # (S, B, 2)
    return out[:, :, :X_DIM], out[:, :, X_DIM:]


if __name__ == "__main__":
    key = jax.random.PRNGKey(0)
    kz, kp = jax.random.split(key)

    seq_len, batch = 8, 2
    z = jax.random.normal(kz, (seq_len, batch, Z_DIM), jnp.float32)
    w1, b1, w2, b2 = init_params(kp)

    mu, logvar = decoder_mlp_forward(z, w1, b1, w2, b2)
    jax.block_until_ready((mu, logvar))

    mu_ref, logvar_ref = reference_forward(z, w1, b1, w2, b2)
    assert mu.shape == (seq_len, batch, X_DIM)
    assert logvar.shape == (seq_len, batch, X_DIM)
    assert jnp.allclose(mu, mu_ref, atol=1e-5, rtol=1e-5)
    assert jnp.allclose(logvar, logvar_ref, atol=1e-5, rtol=1e-5)

    print("KERNEL_OK")
</pallas_src>

<mosaic_0001>
module attributes {stable_mosaic.version = 11 : i64} {
  func.func @_decoder_mlp_kernel(%arg0: i32, %arg1: memref<16x128xf32, #tpu.memory_space<vmem>>, %arg2: memref<16x16xf32, #tpu.memory_space<vmem>>, %arg3: memref<16x1xf32, #tpu.memory_space<vmem>>, %arg4: memref<16x2xf32, #tpu.memory_space<vmem>>, %arg5: memref<2x1xf32, #tpu.memory_space<vmem>>, %arg6: memref<2x128xf32, #tpu.memory_space<vmem>>) attributes {dimension_semantics = [#tpu.dimension_semantics<parallel>], iteration_bounds = array<i64: 1>, scalar_prefetch = 0 : i64, scratch_operands = 0 : i64, tpu.core_type = #tpu.core_type<tc>, window_params = [{transform_indices = @transform_0, window_bounds = array<i64: 16, 128>}, {pipeline_mode = #tpu.pipeline_mode<synchronous>, transform_indices = @transform_1, window_bounds = array<i64: 16, 16>}, {pipeline_mode = #tpu.pipeline_mode<synchronous>, transform_indices = @transform_2, window_bounds = array<i64: 16, 1>}, {pipeline_mode = #tpu.pipeline_mode<synchronous>, transform_indices = @transform_3, window_bounds = array<i64: 16, 2>}, {pipeline_mode = #tpu.pipeline_mode<synchronous>, transform_indices = @transform_4, window_bounds = array<i64: 2, 1>}, {transform_indices = @transform_5, window_bounds = array<i64: 2, 128>}]} {
    %c0 = arith.constant 0 : index
    %c0_0 = arith.constant 0 : index
    %0 = vector.load %arg1[%c0, %c0_0] : memref<16x128xf32, #tpu.memory_space<vmem>>, vector<16x128xf32>
    %c0_1 = arith.constant 0 : index
    %c0_2 = arith.constant 0 : index
    %1 = vector.load %arg2[%c0_1, %c0_2] : memref<16x16xf32, #tpu.memory_space<vmem>>, vector<16x16xf32>
    %cst = arith.constant dense<0.000000e+00> : vector<16x128xf32>
    %2 = tpu.matmul %1, %0, %cst {dimension_numbers = #tpu.dot_dimension_numbers<[1], [0], [0], [1], [0, 0, 1, 1], [], []>} : vector<16x16xf32>, vector<16x128xf32>, vector<16x128xf32> -> vector<16x128xf32>
    %c0_3 = arith.constant 0 : index
    %c0_4 = arith.constant 0 : index
    %3 = vector.load %arg3[%c0_3, %c0_4] : memref<16x1xf32, #tpu.memory_space<vmem>>, vector<16x1xf32>
    %4 = vector.broadcast %3 : vector<16x1xf32> to vector<16x128xf32>
    %5 = arith.addf %2, %4 : vector<16x128xf32>
    %6 = math.tanh %5 : vector<16x128xf32>
    %c0_5 = arith.constant 0 : index
    %c0_6 = arith.constant 0 : index
    %7 = vector.load %arg4[%c0_5, %c0_6] : memref<16x2xf32, #tpu.memory_space<vmem>>, vector<16x2xf32>
    %c0_7 = arith.constant 0 : index
    %c0_8 = arith.constant 0 : index
    %8 = vector.load %arg5[%c0_7, %c0_8] : memref<2x1xf32, #tpu.memory_space<vmem>>, vector<2x1xf32>
    %9 = vector.extract_strided_slice %7 {offsets = [0, 0], sizes = [16, 1], strides = [1, 1]} : vector<16x2xf32> to vector<16x1xf32>
    %10 = vector.broadcast %9 : vector<16x1xf32> to vector<16x128xf32>
    %11 = arith.mulf %10, %6 : vector<16x128xf32>
    %cst_9 = arith.constant dense<0.000000e+00> : vector<128xf32>
    %12 = vector.multi_reduction <add>, %11, %cst_9 [0] : vector<16x128xf32> to vector<128xf32>
    %13 = vector.shape_cast %12 : vector<128xf32> to vector<1x128xf32>
    %14 = vector.extract_strided_slice %8 {offsets = [0, 0], sizes = [1, 1], strides = [1, 1]} : vector<2x1xf32> to vector<1x1xf32>
    %15 = vector.broadcast %14 : vector<1x1xf32> to vector<1x128xf32>
    %16 = arith.addf %13, %15 : vector<1x128xf32>
    %17 = vector.extract_strided_slice %7 {offsets = [0, 1], sizes = [16, 1], strides = [1, 1]} : vector<16x2xf32> to vector<16x1xf32>
    %18 = vector.broadcast %17 : vector<16x1xf32> to vector<16x128xf32>
    %19 = arith.mulf %18, %6 : vector<16x128xf32>
    %cst_10 = arith.constant dense<0.000000e+00> : vector<128xf32>
    %20 = vector.multi_reduction <add>, %19, %cst_10 [0] : vector<16x128xf32> to vector<128xf32>
    %21 = vector.shape_cast %20 : vector<128xf32> to vector<1x128xf32>
    %22 = vector.extract_strided_slice %8 {offsets = [1, 0], sizes = [1, 1], strides = [1, 1]} : vector<2x1xf32> to vector<1x1xf32>
    %23 = vector.broadcast %22 : vector<1x1xf32> to vector<1x128xf32>
    %24 = arith.addf %21, %23 : vector<1x128xf32>
    %25 = tpu.concatenate %16, %24 in 0 : vector<1x128xf32>, vector<1x128xf32> -> vector<2x128xf32>
    %c0_11 = arith.constant 0 : index
    %c0_12 = arith.constant 0 : index
    %26 = vector.load %arg6[%c0_11, %c0_12] : memref<2x128xf32, #tpu.memory_space<vmem>>, vector<2x128xf32>
    tpu.vector_store %arg6[%c0_11, %c0_12], %25 {strides = array<i32>} : memref<2x128xf32, #tpu.memory_space<vmem>>, vector<2x128xf32>,
    return
  }
  func.func @transform_0(%arg0: i32) -> (i32, i32) {
    %c0_i32 = arith.constant 0 : i32
    %c0_i32_0 = arith.constant 0 : i32
    return %c0_i32, %arg0 : i32, i32
  }
  func.func @transform_1(%arg0: i32) -> (i32, i32) {
    %c0_i32 = arith.constant 0 : i32
    %c0_i32_0 = arith.constant 0 : i32
    %c0_i32_1 = arith.constant 0 : i32
    return %c0_i32, %c0_i32_0 : i32, i32
  }
  func.func @transform_2(%arg0: i32) -> (i32, i32) {
    %c0_i32 = arith.constant 0 : i32
    %c0_i32_0 = arith.constant 0 : i32
    %c0_i32_1 = arith.constant 0 : i32
    return %c0_i32, %c0_i32_0 : i32, i32
  }
  func.func @transform_3(%arg0: i32) -> (i32, i32) {
    %c0_i32 = arith.constant 0 : i32
    %c0_i32_0 = arith.constant 0 : i32
    %c0_i32_1 = arith.constant 0 : i32
    return %c0_i32, %c0_i32_0 : i32, i32
  }
  func.func @transform_4(%arg0: i32) -> (i32, i32) {
    %c0_i32 = arith.constant 0 : i32
    %c0_i32_0 = arith.constant 0 : i32
    %c0_i32_1 = arith.constant 0 : i32
    return %c0_i32, %c0_i32_0 : i32, i32
  }
  func.func @transform_5(%arg0: i32) -> (i32, i32) {
    %c0_i32 = arith.constant 0 : i32
    %c0_i32_0 = arith.constant 0 : i32
    return %c0_i32, %arg0 : i32, i32
  }
}

</mosaic_0001>

<llo_original>
// kernel: squeeze.3
$region0: #{squeeze.3}
  %s0 = inlined_call_operand.vmem [shape: f32[16], index: 0, kind: input, shape index: {}]
  %s1 = inlined_call_operand.vmem [shape: f32[8,2,1], index: 1, kind: output, shape index: {}]
  $region1: #{squeeze.3} parent=0
    #allocation0 [shape = 'u8[4096]{0}', space=vmem, size = 0x1000, scoped, tag = 'scoped mem for input reshape']
    %s3 = sshllo.u32 0, 1
    %v4 = vld [vmem:[%s0] sm:%s3]
    %5 = vst [vmem:[#allocation0] sm:%s3] %v4
    %v6 = vld [vmem:[#allocation0] sm:$0x1]
    %vm7 = vcmask 15360
    %8 = vst.msk [vmem:[%s1] sm:$0x1] %vm7, %v6
    %v9 = vld [vmem:[#allocation0] sm:$0x1]
    %10 = vrot.lane.b32.xlu0 %v9, 126
    %v11 = vpop.permute.xlu0 %10
    %vm12 = vcmask 15360
    %s13 = scalar_lea.vmem %s1, 1
    %14 = vst.msk [vmem:[%s13] sm:$0x1] %vm12, %v11
    %v15 = vld [vmem:[#allocation0] sm:$0x1]
    %16 = vrot.lane.b32.xlu0 %v15, 124
    %v17 = vpop.permute.xlu0 %16
    %vm18 = vcmask 15360
    %s19 = scalar_lea.vmem %s1, 2
    %20 = vst.msk [vmem:[%s19] sm:$0x1] %vm18, %v17
    %v21 = vld [vmem:[#allocation0] sm:$0x1]
    %22 = vrot.lane.b32.xlu0 %v21, 122
    %v23 = vpop.permute.xlu0 %22
    %vm24 = vcmask 15360
    %s25 = scalar_lea.vmem %s1, 3
    %26 = vst.msk [vmem:[%s25] sm:$0x1] %vm24, %v23
    %v27 = vld [vmem:[#allocation0] sm:$0x1]
    %28 = vrot.lane.b32.xlu0 %v27, 120
    %v29 = vpop.permute.xlu0 %28
    %vm30 = vcmask 15360
    %s31 = scalar_lea.vmem %s1, 4
    %32 = vst.msk [vmem:[%s31] sm:$0x1] %vm30, %v29
    %v33 = vld [vmem:[#allocation0] sm:$0x1]
    %34 = vrot.lane.b32.xlu0 %v33, 118
    %v35 = vpop.permute.xlu0 %34
    %vm36 = vcmask 15360
    %s37 = scalar_lea.vmem %s1, 5
    %38 = vst.msk [vmem:[%s37] sm:$0x1] %vm36, %v35
    %v39 = vld [vmem:[#allocation0] sm:$0x1]
    %40 = vrot.lane.b32.xlu0 %v39, 116
    %v41 = vpop.permute.xlu0 %40
    %vm42 = vcmask 15360
    %s43 = scalar_lea.vmem %s1, 6
    %44 = vst.msk [vmem:[%s43] sm:$0x1] %vm42, %v41
    %v45 = vld [vmem:[#allocation0] sm:$0x1]
    %46 = vrot.lane.b32.xlu0 %v45, 114
    %v47 = vpop.permute.xlu0 %46
    %vm48 = vcmask 15360
    %s49 = scalar_lea.vmem %s1, 7
    %50 = vst.msk [vmem:[%s49] sm:$0x1] %vm48, %v47

// kernel: decoder_mlp_forward.1
$region0: #{decoder_mlp_forward.1}
  #allocation0 [shape = 'u32[]', space=smem, size = 0x4, offset = 0x4, fixed_abs, tag = 'smem constant byte address 0x4 - core index']
  #allocation1 [shape = 'u32[144,128]{1,0:T(1,128)}', space=vmem, size = 0x12000, scoped, tag = 'internal scratch']
  %s0 = inlined_call_operand.vmem [shape: f32[16,128], index: 0, kind: input, shape index: {}]
  %s1 = inlined_call_operand.vmem [shape: f32[16,16], index: 1, kind: input, shape index: {}]
  %s2 = inlined_call_operand.vmem [shape: f32[16,1], index: 2, kind: input, shape index: {}]
  %s3 = inlined_call_operand.vmem [shape: f32[16,2], index: 3, kind: input, shape index: {}]
  %s4 = inlined_call_operand.vmem [shape: f32[2,1], index: 4, kind: input, shape index: {}]
  %s5 = inlined_call_operand.vmem [shape: f32[2,128], index: 5, kind: output, shape index: {}]
  %s6 = sld [smem:[#allocation0]]
  $region30: #{decoder_mlp_forward.1} parent=0
    _
  %s8 = ssub.s32 1, %s6
  %s9 = scalar_select 0, %s8, %s6
  // Predicated region
  $region2: #{decoder_mlp_forward.1} parent=0 // pred_check
    _
  $region3: #{decoder_mlp_forward.1} parent=0 // pred_check_branch
    %11 = sbr.rel (0) target = $region5
  $region4: #{decoder_mlp_forward.1} parent=0 // pred_region
    _
  $region5: #{decoder_mlp_forward.1} parent=0 // pred_fallthru
    _
  // Predicated region
  $region6: #{decoder_mlp_forward.1} parent=0 // pred_check
    _
  $region7: #{decoder_mlp_forward.1} parent=0 // pred_check_branch
    %13 = sbr.rel (0) target = $region9
  $region8: #{decoder_mlp_forward.1} parent=0 // pred_region
    _
  $region9: #{decoder_mlp_forward.1} parent=0 // pred_fallthru
    _
  // Predicated region
  $region10: #{decoder_mlp_forward.1} parent=0 // pred_check
    _
  $region11: #{decoder_mlp_forward.1} parent=0 // pred_check_branch
    %15 = sbr.rel (0) target = $region13
  $region12: #{decoder_mlp_forward.1} parent=0 // pred_region
    _
  $region13: #{decoder_mlp_forward.1} parent=0 // pred_fallthru
    _
  // Predicated region
  $region14: #{decoder_mlp_forward.1} parent=0 // pred_check
    _
  $region15: #{decoder_mlp_forward.1} parent=0 // pred_check_branch
    %17 = sbr.rel (0) target = $region17
  $region16: #{decoder_mlp_forward.1} parent=0 // pred_region
    _
  $region17: #{decoder_mlp_forward.1} parent=0 // pred_fallthru
    _
  // Predicated region
  $region18: #{decoder_mlp_forward.1} parent=0 // pred_check
    _
  $region19: #{decoder_mlp_forward.1} parent=0 // pred_check_branch
    %19 = sbr.rel (0) target = $region21
  $region20: #{decoder_mlp_forward.1} parent=0 // pred_region
    _
  $region21: #{decoder_mlp_forward.1} parent=0 // pred_fallthru
    _
  %v20 = vld [vmem:[%s0] sm:$0xff]
  %v21 = vld [vmem:[%s0 + $0x8] sm:$0xff]
  %v22 = vld [vmem:[%s1] sm:$0xff]
  %v23 = vld [vmem:[%s1 + $0x8] sm:$0xff]
  %v24 = vld [vmem:[%s2] sm:$0xff]
  %v25 = vld [vmem:[%s2 + $0x8] sm:$0xff]
  %27 = vset.pattern.permute.xlu0 0
  %28 = vperm.xlu0 %27, %v24
  %v29 = vpop.permute.xlu0 %28
  %32 = vset.pattern.permute.xlu0 0
  %33 = vperm.xlu0 %32, %v25
  %v34 = vpop.permute.xlu0 %33
  %vm36 = vcmask 130048
  %v38 = vsel %vm36, %v22, 0
  %v41 = vsel %vm36, %v23, 0
  %43 = vmatprep.subr.mxu0 0.0
  %44 = vmatpush1.msra.mxu0 %v20
  %45 = vmatprep.subr.mxu0 0.0
  %46 = vmatpush1.msra.mxu0 %v21
  %47 = vmatprep.subr.mxu0 0.0
  %48 = vmatpush1.msra.mxu0 0.0
  %49 = vmatprep.subr.mxu0 0.0
  %50 = vmatpush1.msra.mxu0 0.0
  %51 = vmatprep.subr.mxu0 0.0
  %52 = vmatpush1.msra.mxu0 0.0
  %53 = vmatprep.subr.mxu0 0.0
  %54 = vmatpush1.msra.mxu0 0.0
  %55 = vmatprep.subr.mxu0 0.0
  %56 = vmatpush1.msra.mxu0 0.0
  %57 = vmatprep.subr.mxu0 0.0
  %58 = vmatpush1.msra.mxu0 0.0
  %59 = vmatprep.subr.mxu0 0.0
  %60 = vmatpush1.msra.mxu0 0.0
  %61 = vmatprep.subr.mxu0 0.0
  %62 = vmatpush1.msra.mxu0 0.0
  %63 = vmatprep.subr.mxu0 0.0
  %64 = vmatpush1.msra.mxu0 0.0
  %65 = vmatprep.subr.mxu0 0.0
  %66 = vmatpush1.msra.mxu0 0.0
  %67 = vmatprep.subr.mxu0 0.0
  %68 = vmatpush1.msra.mxu0 0.0
  %69 = vmatprep.subr.mxu0 0.0
  %70 = vmatpush1.msra.mxu0 0.0
  %71 = vmatprep.subr.mxu0 0.0
  %72 = vmatpush1.msra.mxu0 0.0
  %73 = vmatprep.subr.mxu0 0.0
  %74 = vmatpush1.msra.mxu0 0.0
  %75 = vmatprep.subr.mxu0 0.0
  %76 = vmatpush1.msra.mxu0 0.0
  %77 = vmatprep.subr.mxu0 0.0
  %78 = vmatpush1.msra.mxu0 0.0
  %79 = vmatprep.subr.mxu0 0.0
  %80 = vmatpush1.msra.mxu0 0.0
  %81 = vmatprep.subr.mxu0 0.0
  %82 = vmatpush1.msra.mxu0 0.0
  %83 = vmatprep.subr.mxu0 0.0
  %84 = vmatpush1.msra.mxu0 0.0
  %85 = vmatprep.subr.mxu0 0.0
  %86 = vmatpush1.msra.mxu0 0.0
  %87 = vmatprep.subr.mxu0 0.0
  %88 = vmatpush1.msra.mxu0 0.0
  %89 = vmatprep.subr.mxu0 0.0
  %90 = vmatpush1.msra.mxu0 0.0
  %91 = vmatprep.subr.mxu0 0.0
  %92 = vmatpush1.msra.mxu0 0.0
  %93 = vmatprep.subr.mxu0 0.0
  %94 = vmatpush1.msra.mxu0 0.0
  %95 = vmatprep.subr.mxu0 0.0
  %96 = vmatpush1.msra.mxu0 0.0
  %97 = vmatprep.subr.mxu0 0.0
  %98 = vmatpush1.msra.mxu0 0.0
  %99 = vmatprep.subr.mxu0 0.0
  %100 = vmatpush1.msra.mxu0 0.0
  %101 = vmatprep.subr.mxu0 0.0
  %102 = vmatpush1.msra.mxu0 0.0
  %103 = vmatprep.subr.mxu0 0.0
  %104 = vmatpush1.msra.mxu0 0.0
  %105 = vmatprep.subr.mxu0 0.0
  %106 = vmatpush1.msra.mxu0 0.0
  %107 = vmatprep.mubr.f32.mxu0 0.0
  %108 = vmatmul.mubr.f32.gmra.mrb[0].mxu0 %v38
  %v109 = vpop.f32.mrb[0].mxu0
  %v110 = vadd.f32 %v29, %v109
  %v111 = vpop.f32.mrb[0].mxu0
  %112 = vmatprep.mubr.f32.mxu0 0.0
  %113 = vmatmul.mubr.f32.gmra.mrb[0].mxu0 %v41
  %v114 = vpop.f32.mrb[0].mxu0
  %v115 = vadd.f32 %v34, %v114
  %v116 = vpop.f32.mrb[0].mxu0
  %117 = vdwg.mxu0
  %v118 = vtanh.pop %v110
  %v119 = vtanh.pop %v115
  %v120 = vld [vmem:[%s3] sm:$0xff]
  %v121 = vld [vmem:[%s3 + $0x8] sm:$0xff]
  %v122 = vld [vmem:[%s4] sm:$0x3]
  %124 = vset.pattern.permute.xlu0 0
  %125 = vperm.xlu0 %124, %v120
  %v126 = vpop.permute.xlu0 %125
  %129 = vset.pattern.permute.xlu0 0
  %130 = vperm.xlu0 %129, %v121
  %v131 = vpop.permute.xlu0 %130
  %v133 = vmul.f32 %v126, %v118
  %v134 = vmul.f32 %v131, %v119
  %v135 = vadd.f32 %v133, %v134
  %v136 = vrot.slane %v135, 4
  %v137 = vadd.f32 %v135, %v136
  %v138 = vrot.slane %v137, 2
  %v139 = vadd.f32 %v137, %v138
  %v140 = vrot.slane %v139, 1
  %v141 = vadd.f32 %v139, %v140
  %143 = vset.pattern.permute.xlu0 0
  %144 = vperm.xlu0 %143, %v122
  %v145 = vpop.permute.xlu0 %144
  %v147 = vadd.f32 %v141, %v145
  %148 = vset.pattern.permute.xlu0 1
  %149 = vperm.xlu0 %148, %v120
  %v150 = vpop.permute.xlu0 %149
  %152 = vset.pattern.permute.xlu0 1
  %153 = vperm.xlu0 %152, %v121
  %v154 = vpop.permute.xlu0 %153
  %v156 = vmul.f32 %v150, %v118
  %v157 = vmul.f32 %v154, %v119
  %v158 = vadd.f32 %v156, %v157
  %v159 = vrot.slane %v158, 4
  %v160 = vadd.f32 %v158, %v159
  %v161 = vrot.slane %v160, 2
  %v162 = vadd.f32 %v160, %v161
  %v163 = vrot.slane %v162, 1
  %v164 = vadd.f32 %v162, %v163
  %v165 = vadd.f32 %v164, %v145
  %vm166 = vcmask 1040384
  %v167 = vsel %vm166, %v147, %v165
  %168 = vst [vmem:[%s5] sm:$0x3] %v167
  // Predicated region
  $region22: #{decoder_mlp_forward.1} parent=0 // pred_check
    _
  $region23: #{decoder_mlp_forward.1} parent=0 // pred_check_branch
    %170 = sbr.rel (0) target = $region25
  $region24: #{decoder_mlp_forward.1} parent=0 // pred_region
    _
  $region25: #{decoder_mlp_forward.1} parent=0 // pred_fallthru
    _
  // Predicated region
  $region26: #{decoder_mlp_forward.1} parent=0 // pred_check
    _
  $region27: #{decoder_mlp_forward.1} parent=0 // pred_check_branch
    %172 = sbr.rel (0) target = $region29
  $region28: #{decoder_mlp_forward.1} parent=0 // pred_region
    _
  $region29: #{decoder_mlp_forward.1} parent=0 // pred_fallthru
    _

</llo_original>
